<compile_context>
chip_gen: v5e
topology: v5e:2x2
jax: 0.10.0
libtpu: 0.0.40
codegen_flags: <defaults>
</compile_context>

<pallas_src>
import jax
import jax.numpy as jnp
from jax import lax
from jax.experimental import pallas as pl
from jax.experimental.pallas import tpu as pltpu

# config (small, self-consistent with the module):
B = 8          # batch
V = 512        # vocab_size
H = 32         # decoder_hidden_size  (enc_linear1 out = 2*H)
NZ = 16        # n_z
NZH = NZ // 2  # n_z / 2
NT = 8         # n_topic_num
TAU = 0.5      # gumbel temperature (config.tau), config.one_user == True
MISC_W = 128   # lane-dense packed misc output width

# row offsets inside the packed "small operands" buffer ([SMALL_ROWS, NZ]):
EPS_OFF = 0                    # [B, NZ]   reparam noise
EMB_OFF = EPS_OFF + B          # [NT, NZ]  topic embedding table
WU1_OFF = EMB_OFF + NT         # [NZ, NZH] get_user.linear1 (cols 0:NZH)
GUM_OFF = WU1_OFF + NZ         # [B, NT]   gumbel noise     (cols 0:NT)
WU2_OFF = GUM_OFF + B          # [NZH, NT] get_user.linear2 (cols 0:NT)
BU1_OFF = WU2_OFF + NZH        # [1, NZH]
BU2_OFF = BU1_OFF + 1          # [1, NT]
SMALL_ROWS = BU2_OFF + 1       # 50


def _fwd_kernel(bow_ref, w1b_ref, w2b_ref, wmlb_ref, wdb_ref, small_ref,
                out_ref, mask_ref, misc_ref):
    f32 = jnp.float32

    bow = bow_ref[...]                                        # [B, V]
    mask_ref[...] = (bow > 0).astype(f32)                     # bow_mask

    # unpack coalesced small operands (static row/lane slices)
    eps = small_ref[EPS_OFF:EPS_OFF + B, :]                   # [B, NZ]
    emb = small_ref[EMB_OFF:EMB_OFF + NT, :]                  # [NT, NZ]
    wu1 = small_ref[WU1_OFF:WU1_OFF + NZ, 0:NZH]              # [NZ, NZH]
    gum = small_ref[GUM_OFF:GUM_OFF + B, 0:NT]                # [B, NT]
    wu2 = small_ref[WU2_OFF:WU2_OFF + NZH, 0:NT]              # [NZH, NT]
    bu1 = small_ref[BU1_OFF:BU1_OFF + 1, 0:NZH]               # [1, NZH]
    bu2 = small_ref[BU2_OFF:BU2_OFF + 1, 0:NT]                # [1, NT]

    # ---- encode (biases are the last row of each packed weight) ----
    h = jnp.tanh(jnp.dot(bow, w1b_ref[0:V, :], preferred_element_type=f32)
                 + w1b_ref[V:V + 1, :])
    h = jnp.tanh(jnp.dot(h, w2b_ref[0:2 * H, :], preferred_element_type=f32)
                 + w2b_ref[2 * H:2 * H + 1, :])
    # fused mu | logvar projection: one [H, 2*NZ] matmul
    mulv = (jnp.dot(h, wmlb_ref[0:H, :], preferred_element_type=f32)
            + wmlb_ref[H:H + 1, :])                           # [B, 2*NZ]
    mu = mulv[:, 0:NZ]
    logvar = mulv[:, NZ:2 * NZ]
    z = mu + eps * jnp.exp(0.5 * logvar)                      # [B, NZ]

    # ---- GetUser (exact divides: keeps log/argmax path bit-stable) ----
    lat = jnp.tanh(jnp.dot(z, wu1, preferred_element_type=f32) + bu1)
    logits = jnp.dot(lat, wu2, preferred_element_type=f32) + bu2
    m0 = jnp.max(logits, axis=-1, keepdims=True)
    e0 = jnp.exp(logits - m0)
    p0 = e0 / jnp.sum(e0, axis=-1, keepdims=True)             # softmax
    # one_user == True -> gumbel_softmax(log(p + 1e-10), tau)
    y = (jnp.log(p0 + 1e-10) + gum) / TAU
    m1 = jnp.max(y, axis=-1, keepdims=True)
    e1 = jnp.exp(y - m1)
    p_user = e1 / jnp.sum(e1, axis=-1, keepdims=True)         # [B, NT]

    ids = lax.broadcasted_iota(jnp.int32, (B, NT), 1)
    pmax = jnp.max(p_user, axis=-1, keepdims=True)
    sel = jnp.min(jnp.where(p_user == pmax, ids, NT),
                  axis=-1, keepdims=True)                     # argmax, [B, 1]
    sel_f = sel.astype(f32)

    # ---- decoder: log(softmax(-(z @ Wd + bd)) + 1e-4) ----
    dl = -(jnp.dot(z, wdb_ref[0:NZ, :], preferred_element_type=f32)
           + wdb_ref[NZ:NZ + 1, :])                           # [B, V]
    md = jnp.max(dl, axis=-1, keepdims=True)
    ed = jnp.exp(dl - md)
    inv = pl.reciprocal(jnp.sum(ed, axis=-1, keepdims=True), approx=True)
    out_ref[...] = jnp.log(ed * inv + 0.0001)                 # [B, V]

    # ---- kld, rewritten algebraically (no [B, NT, NZ] intermediate) ----
    # sum_t p[b,t] * sum_z -0.5*(logvar[b,z] - (z[b,z]-emb[t,z])^2)
    #   = -0.5*psum*sum(logvar) + 0.5*(psum*||z||^2 - 2*sum_t p*(z.emb_t)
    #                                  + sum_t p*||emb_t||^2)
    psum = jnp.sum(p_user, axis=-1, keepdims=True)            # [B, 1] (~1)
    sum_lv = jnp.sum(logvar, axis=-1, keepdims=True)          # [B, 1]
    z_sq = jnp.sum(z * z, axis=-1, keepdims=True)             # [B, 1]
    ze = jnp.dot(z, emb.T, preferred_element_type=f32)        # [B, NT]
    emb_sq = jnp.sum(emb * emb, axis=-1, keepdims=True)       # [NT, 1]
    cross = jnp.sum(p_user * ze, axis=-1, keepdims=True)      # [B, 1]
    pe = jnp.dot(p_user, emb_sq, preferred_element_type=f32)  # [B, 1]
    kld_b = -0.5 * psum * sum_lv + 0.5 * (psum * z_sq - 2.0 * cross + pe)
    kld_s = jnp.mean(kld_b)

    # ---- pack p_user | selected_user | kld into one lane-dense slab ----
    r8 = lax.broadcasted_iota(jnp.int32, (NT, MISC_W), 0)
    c8 = lax.broadcasted_iota(jnp.int32, (NT, MISC_W), 1)
    scatter = (r8 == c8).astype(f32)                          # eye in cols 0:NT
    p_wide = jnp.dot(p_user, scatter, preferred_element_type=f32)   # [B, 128]
    col = lax.broadcasted_iota(jnp.int32, (B, MISC_W), 1)
    misc_ref[...] = (p_wide
                     + sel_f * (col == NT).astype(f32)
                     + kld_s * (col == NT + 1).astype(f32))


def user_autoenc_vae_bow_forward(tgt_bow, eps, gumbel, params):
    (w1, b1, w2, b2, wmu, bmu, wlv, blv, wdec, bdec,
     wu1, bu1, wu2, bu2, emb) = params

    # fold each bias into its weight as one extra row; fuse mu/logvar weights
    w1b = jnp.concatenate([w1, b1], axis=0)                    # [V+1, 2H]
    w2b = jnp.concatenate([w2, b2], axis=0)                    # [2H+1, H]
    wmlb = jnp.concatenate(
        [jnp.concatenate([wmu, wlv], axis=1),
         jnp.concatenate([bmu, blv], axis=1)], axis=0)         # [H+1, 2NZ]
    wdb = jnp.concatenate([wdec, bdec], axis=0)                # [NZ+1, V]

    # coalesce all remaining tiny operands into one buffer (1 DMA)
    def pad16(x):
        return jnp.pad(x, ((0, 0), (0, NZ - x.shape[1])))
    small = jnp.concatenate(
        [pad16(eps), pad16(emb), pad16(wu1), pad16(gumbel),
         pad16(wu2), pad16(bu1), pad16(bu2)], axis=0)          # [SMALL_ROWS, NZ]

    vmem = pl.BlockSpec(memory_space=pltpu.MemorySpace.VMEM)
    out_shapes = (
        jax.ShapeDtypeStruct((B, V), jnp.float32),       # outputs (dec_hidden)
        jax.ShapeDtypeStruct((B, V), jnp.float32),       # mask
        jax.ShapeDtypeStruct((B, MISC_W), jnp.float32),  # packed p_user|sel|kld
    )

    dec_hidden, mask, misc = pl.pallas_call(
        _fwd_kernel,
        out_shape=out_shapes,
        in_specs=[vmem] * 6,
        out_specs=(vmem, vmem, vmem),
    )(tgt_bow, w1b, w2b, wmlb, wdb, small)

    p_user = misc[:, :NT]
    sel = misc[:, NT].astype(jnp.int32)
    kld = misc[0, NT + 1]

    # emb-only regularizers: batch independent -> plain XLA, runs alongside
    # the pallas_call instead of on its serial critical path.
    eye = jnp.eye(NT, dtype=jnp.float32)
    gram = emb @ emb.T
    reg = jnp.sqrt(jnp.sum(((gram - eye) * (1.0 - eye)) ** 2))
    unorm = jnp.mean(jnp.sqrt(jnp.sum(emb * emb, axis=1)))

    return {
        'outputs': dec_hidden,
        'kld': kld,
        'mask': mask,
        'reg': reg,
        'user_norm': unorm,
        'selected_user': sel,
        'p_user': p_user,
    }


def _reference_forward(tgt_bow, eps, gumbel, params):
    """Pure-JAX reference (mirrors the torch forward) for validation."""
    (w1, b1, w2, b2, wmu, bmu, wlv, blv, wdec, bdec,
     wu1, bu1, wu2, bu2, emb) = params
    mask = (tgt_bow > 0).astype(jnp.float32)
    h = jnp.tanh(tgt_bow @ w1 + b1)
    h = jnp.tanh(h @ w2 + b2)
    mu = h @ wmu + bmu
    logvar = h @ wlv + blv
    z = mu + eps * jnp.exp(0.5 * logvar)
    zpm = z[:, None, :] - emb[None, :, :]
    kld_t = -0.5 * (logvar[:, None, :] - zpm ** 2)
    lat = jnp.tanh(z @ wu1 + bu1)
    p_user = jax.nn.softmax(lat @ wu2 + bu2, axis=-1)
    p_user = jax.nn.softmax((jnp.log(p_user + 1e-10) + gumbel) / TAU, axis=-1)
    sel = jnp.argmax(p_user, axis=-1).astype(jnp.int32)
    dec = jnp.log(jax.nn.softmax(-(z @ wdec + bdec), axis=-1) + 0.0001)
    kld = jnp.mean(jnp.sum(jnp.sum(p_user[:, :, None] * kld_t, axis=2), axis=1))
    eye = jnp.eye(NT, dtype=jnp.float32)
    reg = jnp.sqrt(jnp.sum((((emb @ emb.T) - eye) * (1.0 - eye)) ** 2))
    unorm = jnp.mean(jnp.sqrt(jnp.sum(emb ** 2, axis=1)))
    return dec, mask, p_user, sel, kld, reg, unorm


def _make_params(key):
    def lin(k, fan_in, fan_out):
        bound = 1.0 / jnp.sqrt(jnp.float32(fan_in))
        kw, kb = jax.random.split(k)
        w = jax.random.uniform(kw, (fan_in, fan_out), jnp.float32, -bound, bound)
        b = jax.random.uniform(kb, (1, fan_out), jnp.float32, -bound, bound)
        return w, b

    ks = jax.random.split(key, 8)
    w1, b1 = lin(ks[0], V, 2 * H)            # enc_linear1
    w2, b2 = lin(ks[1], 2 * H, H)            # enc_linear2
    wmu, bmu = lin(ks[2], H, NZ)             # hidden_to_mu
    wlv, blv = lin(ks[3], H, NZ)             # hidden_to_logvar
    wdec, bdec = lin(ks[4], NZ, V)           # dec_linear1
    wu1, bu1 = lin(ks[5], NZ, NZH)           # get_user.linear1
    wu2, bu2 = lin(ks[6], NZH, NT)           # get_user.linear2
    emb = jax.random.normal(ks[7], (NT, NZ), jnp.float32)  # get_user.use_emb
    return (w1, b1, w2, b2, wmu, bmu, wlv, blv, wdec, bdec,
            wu1, bu1, wu2, bu2, emb)


if __name__ == "__main__":
    key = jax.random.PRNGKey(0)
    k_bow, k_eps, k_gum, k_params = jax.random.split(key, 4)

    # tgt_bow: bag-of-words counts (many zeros)
    tgt_bow = jax.random.randint(k_bow, (B, V), 0, 4).astype(jnp.float32)
    tgt_bow = tgt_bow * (jax.random.uniform(k_bow, (B, V)) < 0.3).astype(jnp.float32)

    # TODO(synk): torch draws randn/gumbel noise inside forward(); drawn here
    # deterministically with jax.random and passed in as inputs instead.
    eps = jax.random.normal(k_eps, (B, NZ), jnp.float32)          # reparam noise
    u = jax.random.uniform(k_gum, (B, NT), jnp.float32)
    gumbel = -jnp.log(-jnp.log(u + 1e-20) + 1e-20)                # gumbel noise

    params = _make_params(k_params)

    fwd = jax.jit(user_autoenc_vae_bow_forward)
    out = fwd(tgt_bow, eps, gumbel, params)
    jax.block_until_ready(out)

    # sanity check vs pure-JAX reference
    dec_r, mask_r, pu_r, sel_r, kld_r, reg_r, unorm_r = _reference_forward(
        tgt_bow, eps, gumbel, params)
    import numpy as np
    # decoder output uses approx reciprocal on the EUP -> slightly looser tol
    np.testing.assert_allclose(np.asarray(out['outputs']), np.asarray(dec_r),
                               rtol=1e-3, atol=5e-3)
    np.testing.assert_allclose(np.asarray(out['mask']), np.asarray(mask_r), atol=0)
    np.testing.assert_allclose(np.asarray(out['p_user']), np.asarray(pu_r),
                               rtol=5e-4, atol=5e-4)
    np.testing.assert_array_equal(np.asarray(out['selected_user']), np.asarray(sel_r))
    np.testing.assert_allclose(float(out['kld']), float(kld_r), rtol=5e-4, atol=5e-4)
    np.testing.assert_allclose(float(out['reg']), float(reg_r), rtol=2e-4, atol=2e-4)
    np.testing.assert_allclose(float(out['user_norm']), float(unorm_r),
                               rtol=2e-4, atol=2e-4)

    print("KERNEL_OK")
</pallas_src>

<mosaic_0001>
module attributes {stable_mosaic.version = 11 : i64} {
  func.func @_fwd_kernel(%arg0: memref<8x512xf32, #tpu.memory_space<vmem>>, %arg1: memref<513x64xf32, #tpu.memory_space<vmem>>, %arg2: memref<65x32xf32, #tpu.memory_space<vmem>>, %arg3: memref<33x32xf32, #tpu.memory_space<vmem>>, %arg4: memref<17x512xf32, #tpu.memory_space<vmem>>, %arg5: memref<50x16xf32, #tpu.memory_space<vmem>>, %arg6: memref<8x512xf32, #tpu.memory_space<vmem>>, %arg7: memref<8x512xf32, #tpu.memory_space<vmem>>, %arg8: memref<8x128xf32, #tpu.memory_space<vmem>>) attributes {dimension_semantics = [], scalar_prefetch = 0 : i64, scratch_operands = 0 : i64, tpu.core_type = #tpu.core_type<tc>} {
    %c0 = arith.constant 0 : index
    %c0_0 = arith.constant 0 : index
    %0 = vector.load %arg0[%c0, %c0_0] : memref<8x512xf32, #tpu.memory_space<vmem>>, vector<8x512xf32>
    %cst = arith.constant 0.000000e+00 : f32
    %1 = vector.broadcast %cst : f32 to vector<8x512xf32>
    %2 = arith.cmpf ogt, %0, %1 : vector<8x512xf32>
    %3 = arith.extui %2 : vector<8x512xi1> to vector<8x512xi32>
    %4 = arith.sitofp %3 : vector<8x512xi32> to vector<8x512xf32>
    %c0_1 = arith.constant 0 : index
    %c0_2 = arith.constant 0 : index
    %5 = vector.load %arg7[%c0_1, %c0_2] : memref<8x512xf32, #tpu.memory_space<vmem>>, vector<8x512xf32>
    tpu.vector_store %arg7[%c0_1, %c0_2], %4 {strides = array<i32>} : memref<8x512xf32, #tpu.memory_space<vmem>>, vector<8x512xf32>,
    %c0_3 = arith.constant 0 : index
    %c0_4 = arith.constant 0 : index
    %6 = vector.load %arg5[%c0_3, %c0_4] : memref<50x16xf32, #tpu.memory_space<vmem>>, vector<8x16xf32>
    %c8 = arith.constant 8 : index
    %c0_5 = arith.constant 0 : index
    %7 = vector.load %arg5[%c8, %c0_5] : memref<50x16xf32, #tpu.memory_space<vmem>>, vector<8x16xf32>
    %c16 = arith.constant 16 : index
    %c0_6 = arith.constant 0 : index
    %8 = vector.load %arg5[%c16, %c0_6] : memref<50x16xf32, #tpu.memory_space<vmem>>, vector<16x8xf32>
    %c32 = arith.constant 32 : index
    %c0_7 = arith.constant 0 : index
    %9 = vector.load %arg5[%c32, %c0_7] : memref<50x16xf32, #tpu.memory_space<vmem>>, vector<8x8xf32>
    %c40 = arith.constant 40 : index
    %c0_8 = arith.constant 0 : index
    %10 = vector.load %arg5[%c40, %c0_8] : memref<50x16xf32, #tpu.memory_space<vmem>>, vector<8x8xf32>
    %c48 = arith.constant 48 : index
    %c0_9 = arith.constant 0 : index
    %11 = vector.load %arg5[%c48, %c0_9] : memref<50x16xf32, #tpu.memory_space<vmem>>, vector<1x8xf32>
    %c49 = arith.constant 49 : index
    %c0_10 = arith.constant 0 : index
    %12 = vector.load %arg5[%c49, %c0_10] : memref<50x16xf32, #tpu.memory_space<vmem>>, vector<1x8xf32>
    %c0_11 = arith.constant 0 : index
    %c0_12 = arith.constant 0 : index
    %13 = vector.load %arg1[%c0_11, %c0_12] : memref<513x64xf32, #tpu.memory_space<vmem>>, vector<512x64xf32>
    %cst_13 = arith.constant dense<0.000000e+00> : vector<8x64xf32>
    %14 = tpu.matmul %0, %13, %cst_13 {dimension_numbers = #tpu.dot_dimension_numbers<[1], [0], [0], [1], [0, 0, 1, 1], [], []>} : vector<8x512xf32>, vector<512x64xf32>, vector<8x64xf32> -> vector<8x64xf32>
    %c512 = arith.constant 512 : index
    %c0_14 = arith.constant 0 : index
    %15 = vector.load %arg1[%c512, %c0_14] : memref<513x64xf32, #tpu.memory_space<vmem>>, vector<1x64xf32>
    %16 = vector.broadcast %15 : vector<1x64xf32> to vector<8x64xf32>
    %17 = arith.addf %14, %16 : vector<8x64xf32>
    %18 = math.tanh %17 : vector<8x64xf32>
    %c0_15 = arith.constant 0 : index
    %c0_16 = arith.constant 0 : index
    %19 = vector.load %arg2[%c0_15, %c0_16] : memref<65x32xf32, #tpu.memory_space<vmem>>, vector<64x32xf32>
    %cst_17 = arith.constant dense<0.000000e+00> : vector<8x32xf32>
    %20 = tpu.matmul %18, %19, %cst_17 {dimension_numbers = #tpu.dot_dimension_numbers<[1], [0], [0], [1], [0, 0, 1, 1], [], []>} : vector<8x64xf32>, vector<64x32xf32>, vector<8x32xf32> -> vector<8x32xf32>
    %c64 = arith.constant 64 : index
    %c0_18 = arith.constant 0 : index
    %21 = vector.load %arg2[%c64, %c0_18] : memref<65x32xf32, #tpu.memory_space<vmem>>, vector<1x32xf32>
    %22 = vector.broadcast %21 : vector<1x32xf32> to vector<8x32xf32>
    %23 = arith.addf %20, %22 : vector<8x32xf32>
    %24 = math.tanh %23 : vector<8x32xf32>
    %c0_19 = arith.constant 0 : index
    %c0_20 = arith.constant 0 : index
    %25 = vector.load %arg3[%c0_19, %c0_20] : memref<33x32xf32, #tpu.memory_space<vmem>>, vector<32x32xf32>
    %cst_21 = arith.constant dense<0.000000e+00> : vector<8x32xf32>
    %26 = tpu.matmul %24, %25, %cst_21 {dimension_numbers = #tpu.dot_dimension_numbers<[1], [0], [0], [1], [0, 0, 1, 1], [], []>} : vector<8x32xf32>, vector<32x32xf32>, vector<8x32xf32> -> vector<8x32xf32>
    %c32_22 = arith.constant 32 : index
    %c0_23 = arith.constant 0 : index
    %27 = vector.load %arg3[%c32_22, %c0_23] : memref<33x32xf32, #tpu.memory_space<vmem>>, vector<1x32xf32>
    %28 = vector.broadcast %27 : vector<1x32xf32> to vector<8x32xf32>
    %29 = arith.addf %26, %28 : vector<8x32xf32>
    %30 = vector.extract_strided_slice %29 {offsets = [0, 0], sizes = [8, 16], strides = [1, 1]} : vector<8x32xf32> to vector<8x16xf32>
    %31 = vector.extract_strided_slice %29 {offsets = [0, 16], sizes = [8, 16], strides = [1, 1]} : vector<8x32xf32> to vector<8x16xf32>
    %cst_24 = arith.constant 5.000000e-01 : f32
    %32 = vector.broadcast %cst_24 : f32 to vector<8x16xf32>
    %33 = arith.mulf %32, %31 : vector<8x16xf32>
    %34 = math.exp %33 : vector<8x16xf32>
    %35 = arith.mulf %6, %34 : vector<8x16xf32>
    %36 = arith.addf %30, %35 : vector<8x16xf32>
    %cst_25 = arith.constant dense<0.000000e+00> : vector<8x8xf32>
    %37 = tpu.matmul %36, %8, %cst_25 {dimension_numbers = #tpu.dot_dimension_numbers<[1], [0], [0], [1], [0, 0, 1, 1], [], []>} : vector<8x16xf32>, vector<16x8xf32>, vector<8x8xf32> -> vector<8x8xf32>
    %38 = vector.broadcast %11 : vector<1x8xf32> to vector<8x8xf32>
    %39 = arith.addf %37, %38 : vector<8x8xf32>
    %40 = math.tanh %39 : vector<8x8xf32>
    %cst_26 = arith.constant dense<0.000000e+00> : vector<8x8xf32>
    %41 = tpu.matmul %40, %10, %cst_26 {dimension_numbers = #tpu.dot_dimension_numbers<[1], [0], [0], [1], [0, 0, 1, 1], [], []>} : vector<8x8xf32>, vector<8x8xf32>, vector<8x8xf32> -> vector<8x8xf32>
    %42 = vector.broadcast %12 : vector<1x8xf32> to vector<8x8xf32>
    %43 = arith.addf %41, %42 : vector<8x8xf32>
    %cst_27 = arith.constant dense<0xFF800000> : vector<8xf32>
    %44 = vector.multi_reduction <maximumf>, %43, %cst_27 [1] : vector<8x8xf32> to vector<8xf32>
    %45 = vector.shape_cast %44 : vector<8xf32> to vector<8x1xf32>
    %46 = vector.broadcast %45 : vector<8x1xf32> to vector<8x8xf32>
    %47 = arith.subf %43, %46 : vector<8x8xf32>
    %48 = math.exp %47 : vector<8x8xf32>
    %cst_28 = arith.constant dense<0.000000e+00> : vector<8xf32>
    %49 = vector.multi_reduction <add>, %48, %cst_28 [1] : vector<8x8xf32> to vector<8xf32>
    %50 = vector.shape_cast %49 : vector<8xf32> to vector<8x1xf32>
    %51 = vector.broadcast %50 : vector<8x1xf32> to vector<8x8xf32>
    %52 = arith.divf %48, %51 : vector<8x8xf32>
    %cst_29 = arith.constant 1.000000e-10 : f32
    %53 = vector.broadcast %cst_29 : f32 to vector<8x8xf32>
    %54 = arith.addf %52, %53 : vector<8x8xf32>
    %55 = math.log %54 : vector<8x8xf32>
    %56 = arith.addf %55, %9 : vector<8x8xf32>
    %cst_30 = arith.constant 5.000000e-01 : f32
    %57 = vector.broadcast %cst_30 : f32 to vector<8x8xf32>
    %58 = arith.divf %56, %57 : vector<8x8xf32>
    %cst_31 = arith.constant dense<0xFF800000> : vector<8xf32>
    %59 = vector.multi_reduction <maximumf>, %58, %cst_31 [1] : vector<8x8xf32> to vector<8xf32>
    %60 = vector.shape_cast %59 : vector<8xf32> to vector<8x1xf32>
    %61 = vector.broadcast %60 : vector<8x1xf32> to vector<8x8xf32>
    %62 = arith.subf %58, %61 : vector<8x8xf32>
    %63 = math.exp %62 : vector<8x8xf32>
    %cst_32 = arith.constant dense<0.000000e+00> : vector<8xf32>
    %64 = vector.multi_reduction <add>, %63, %cst_32 [1] : vector<8x8xf32> to vector<8xf32>
    %65 = vector.shape_cast %64 : vector<8xf32> to vector<8x1xf32>
    %66 = vector.broadcast %65 : vector<8x1xf32> to vector<8x8xf32>
    %67 = arith.divf %63, %66 : vector<8x8xf32>
    %68 = tpu.iota {dimensions = array<i32: 1>} : vector<8x8xi32>
    %cst_33 = arith.constant dense<0xFF800000> : vector<8xf32>
    %69 = vector.multi_reduction <maximumf>, %67, %cst_33 [1] : vector<8x8xf32> to vector<8xf32>
    %70 = vector.shape_cast %69 : vector<8xf32> to vector<8x1xf32>
    %71 = vector.broadcast %70 : vector<8x1xf32> to vector<8x8xf32>
    %72 = arith.cmpf oeq, %67, %71 : vector<8x8xf32>
    %c8_i32 = arith.constant 8 : i32
    %73 = vector.broadcast %c8_i32 : i32 to vector<8x8xi32>
    %74 = arith.select %72, %68, %73 : vector<8x8xi1>, vector<8x8xi32>
    %cst_34 = arith.constant dense<2147483647> : vector<8xi32>
    %75 = vector.multi_reduction <minsi>, %74, %cst_34 [1] : vector<8x8xi32> to vector<8xi32>
    %76 = vector.shape_cast %75 : vector<8xi32> to vector<8x1xi32>
    %77 = arith.sitofp %76 : vector<8x1xi32> to vector<8x1xf32>
    %c0_35 = arith.constant 0 : index
    %c0_36 = arith.constant 0 : index
    %78 = vector.load %arg4[%c0_35, %c0_36] : memref<17x512xf32, #tpu.memory_space<vmem>>, vector<16x512xf32>
    %cst_37 = arith.constant dense<0.000000e+00> : vector<8x512xf32>
    %79 = tpu.matmul %36, %78, %cst_37 {dimension_numbers = #tpu.dot_dimension_numbers<[1], [0], [0], [1], [0, 0, 1, 1], [], []>} : vector<8x16xf32>, vector<16x512xf32>, vector<8x512xf32> -> vector<8x512xf32>
    %c16_38 = arith.constant 16 : index
    %c0_39 = arith.constant 0 : index
    %80 = vector.load %arg4[%c16_38, %c0_39] : memref<17x512xf32, #tpu.memory_space<vmem>>, vector<1x512xf32>
    %81 = vector.broadcast %80 : vector<1x512xf32> to vector<8x512xf32>
    %82 = arith.addf %79, %81 : vector<8x512xf32>
    %cst_40 = arith.constant 0.000000e+00 : f32
    %83 = vector.broadcast %cst_40 : f32 to vector<8x512xf32>
    %84 = arith.subf %83, %82 : vector<8x512xf32>
    %cst_41 = arith.constant dense<0xFF800000> : vector<8xf32>
    %85 = vector.multi_reduction <maximumf>, %84, %cst_41 [1] : vector<8x512xf32> to vector<8xf32>
    %86 = vector.shape_cast %85 : vector<8xf32> to vector<8x1xf32>
    %87 = vector.broadcast %86 : vector<8x1xf32> to vector<8x512xf32>
    %88 = arith.subf %84, %87 : vector<8x512xf32>
    %89 = math.exp %88 : vector<8x512xf32>
    %cst_42 = arith.constant dense<0.000000e+00> : vector<8xf32>
    %90 = vector.multi_reduction <add>, %89, %cst_42 [1] : vector<8x512xf32> to vector<8xf32>
    %91 = vector.shape_cast %90 : vector<8xf32> to vector<8x1xf32>
    %92 = tpu.reciprocal %91 {approx = true} : vector<8x1xf32> -> vector<8x1xf32>
    %93 = vector.broadcast %92 : vector<8x1xf32> to vector<8x512xf32>
    %94 = arith.mulf %89, %93 : vector<8x512xf32>
    %cst_43 = arith.constant 9.99999974E-5 : f32
    %95 = vector.broadcast %cst_43 : f32 to vector<8x512xf32>
    %96 = arith.addf %94, %95 : vector<8x512xf32>
    %97 = math.log %96 : vector<8x512xf32>
    %c0_44 = arith.constant 0 : index
    %c0_45 = arith.constant 0 : index
    %98 = vector.load %arg6[%c0_44, %c0_45] : memref<8x512xf32, #tpu.memory_space<vmem>>, vector<8x512xf32>
    tpu.vector_store %arg6[%c0_44, %c0_45], %97 {strides = array<i32>} : memref<8x512xf32, #tpu.memory_space<vmem>>, vector<8x512xf32>,
    %cst_46 = arith.constant dense<0.000000e+00> : vector<8xf32>
    %99 = vector.multi_reduction <add>, %67, %cst_46 [1] : vector<8x8xf32> to vector<8xf32>
    %100 = vector.shape_cast %99 : vector<8xf32> to vector<8x1xf32>
    %cst_47 = arith.constant dense<0.000000e+00> : vector<8xf32>
    %101 = vector.multi_reduction <add>, %31, %cst_47 [1] : vector<8x16xf32> to vector<8xf32>
    %102 = vector.shape_cast %101 : vector<8xf32> to vector<8x1xf32>
    %103 = arith.mulf %36, %36 : vector<8x16xf32>
    %cst_48 = arith.constant dense<0.000000e+00> : vector<8xf32>
    %104 = vector.multi_reduction <add>, %103, %cst_48 [1] : vector<8x16xf32> to vector<8xf32>
    %105 = vector.shape_cast %104 : vector<8xf32> to vector<8x1xf32>
    %106 = tpu.transpose %7, [1, 0] : vector<8x16xf32> -> vector<16x8xf32>
    %cst_49 = arith.constant dense<0.000000e+00> : vector<8x8xf32>
    %107 = tpu.matmul %36, %106, %cst_49 {dimension_numbers = #tpu.dot_dimension_numbers<[1], [0], [0], [1], [0, 0, 1, 1], [], []>} : vector<8x16xf32>, vector<16x8xf32>, vector<8x8xf32> -> vector<8x8xf32>
    %108 = arith.mulf %7, %7 : vector<8x16xf32>
    %cst_50 = arith.constant dense<0.000000e+00> : vector<8xf32>
    %109 = vector.multi_reduction <add>, %108, %cst_50 [1] : vector<8x16xf32> to vector<8xf32>
    %110 = vector.shape_cast %109 : vector<8xf32> to vector<8x1xf32>
    %111 = arith.mulf %67, %107 : vector<8x8xf32>
    %cst_51 = arith.constant dense<0.000000e+00> : vector<8xf32>
    %112 = vector.multi_reduction <add>, %111, %cst_51 [1] : vector<8x8xf32> to vector<8xf32>
    %113 = vector.shape_cast %112 : vector<8xf32> to vector<8x1xf32>
    %cst_52 = arith.constant dense<0.000000e+00> : vector<8x1xf32>
    %114 = tpu.matmul %67, %110, %cst_52 {dimension_numbers = #tpu.dot_dimension_numbers<[1], [0], [0], [1], [0, 0, 1, 1], [], []>} : vector<8x8xf32>, vector<8x1xf32>, vector<8x1xf32> -> vector<8x1xf32>
    %cst_53 = arith.constant -5.000000e-01 : f32
    %115 = vector.broadcast %cst_53 : f32 to vector<8x1xf32>
    %116 = arith.mulf %115, %100 : vector<8x1xf32>
    %117 = arith.mulf %116, %102 : vector<8x1xf32>
    %118 = arith.mulf %100, %105 : vector<8x1xf32>
    %cst_54 = arith.constant 2.000000e+00 : f32
    %119 = vector.broadcast %cst_54 : f32 to vector<8x1xf32>
    %120 = arith.mulf %119, %113 : vector<8x1xf32>
    %121 = arith.subf %118, %120 : vector<8x1xf32>
    %122 = arith.addf %121, %114 : vector<8x1xf32>
    %cst_55 = arith.constant 5.000000e-01 : f32
    %123 = vector.broadcast %cst_55 : f32 to vector<8x1xf32>
    %124 = arith.mulf %123, %122 : vector<8x1xf32>
    %125 = arith.addf %117, %124 : vector<8x1xf32>
    %126 = vector.shape_cast %125 : vector<8x1xf32> to vector<1x8x1xf32>
    %cst_56 = arith.constant dense<0.000000e+00> : vector<1xf32>
    %127 = vector.multi_reduction <add>, %126, %cst_56 [1, 2] : vector<1x8x1xf32> to vector<1xf32>
    %128 = vector.shape_cast %127 : vector<1xf32> to vector<1x1x1xf32>
    %129 = vector.extract %128[0, 0, 0] : f32 from vector<1x1x1xf32>
    %cst_57 = arith.constant 8.000000e+00 : f32
    %130 = arith.divf %129, %cst_57 : f32
    %131 = tpu.iota {dimensions = array<i32: 0>} : vector<8x128xi32>
    %132 = tpu.iota {dimensions = array<i32: 1>} : vector<8x128xi32>
    %133 = arith.cmpi eq, %131, %132 : vector<8x128xi32>
    %134 = arith.extui %133 : vector<8x128xi1> to vector<8x128xi32>
    %135 = arith.sitofp %134 : vector<8x128xi32> to vector<8x128xf32>
    %cst_58 = arith.constant dense<0.000000e+00> : vector<8x128xf32>
    %136 = tpu.matmul %67, %135, %cst_58 {dimension_numbers = #tpu.dot_dimension_numbers<[1], [0], [0], [1], [0, 0, 1, 1], [], []>} : vector<8x8xf32>, vector<8x128xf32>, vector<8x128xf32> -> vector<8x128xf32>
    %137 = tpu.iota {dimensions = array<i32: 1>} : vector<8x128xi32>
    %c8_i32_59 = arith.constant 8 : i32
    %138 = vector.broadcast %c8_i32_59 : i32 to vector<8x128xi32>
    %139 = arith.cmpi eq, %137, %138 : vector<8x128xi32>
    %140 = arith.extui %139 : vector<8x128xi1> to vector<8x128xi32>
    %141 = arith.sitofp %140 : vector<8x128xi32> to vector<8x128xf32>
    %142 = vector.broadcast %77 : vector<8x1xf32> to vector<8x128xf32>
    %143 = arith.mulf %142, %141 : vector<8x128xf32>
    %144 = arith.addf %136, %143 : vector<8x128xf32>
    %c9_i32 = arith.constant 9 : i32
    %145 = vector.broadcast %c9_i32 : i32 to vector<8x128xi32>
    %146 = arith.cmpi eq, %137, %145 : vector<8x128xi32>
    %147 = arith.extui %146 : vector<8x128xi1> to vector<8x128xi32>
    %148 = arith.sitofp %147 : vector<8x128xi32> to vector<8x128xf32>
    %149 = vector.broadcast %130 : f32 to vector<8x128xf32>
    %150 = arith.mulf %149, %148 : vector<8x128xf32>
    %151 = arith.addf %144, %150 : vector<8x128xf32>
    %c0_60 = arith.constant 0 : index
    %c0_61 = arith.constant 0 : index
    %152 = vector.load %arg8[%c0_60, %c0_61] : memref<8x128xf32, #tpu.memory_space<vmem>>, vector<8x128xf32>
    tpu.vector_store %arg8[%c0_60, %c0_61], %151 {strides = array<i32>} : memref<8x128xf32, #tpu.memory_space<vmem>>, vector<8x128xf32>,
    return
  }
}

</mosaic_0001>

<llo_original>
// kernel: user_autoenc_vae_bow_forward.1
$region0: #{user_autoenc_vae_bow_forward.1}
  #allocation0 [shape = 'u32[]', space=smem, size = 0x4, offset = 0x4, fixed_abs, tag = 'smem constant byte address 0x4 - core index']
  #allocation1 [shape = 'u32[72,128]{1,0:T(1,128)}', space=vmem, size = 0x9000, scoped, tag = 'internal scratch']
  %s0 = inlined_call_operand.vmem [shape: f32[8,512], index: 0, kind: input, shape index: {}]
  %s1 = inlined_call_operand.vmem [shape: f32[513,64], index: 1, kind: input, shape index: {}]
  %s2 = inlined_call_operand.vmem [shape: f32[65,32], index: 2, kind: input, shape index: {}]
  %s3 = inlined_call_operand.vmem [shape: f32[33,32], index: 3, kind: input, shape index: {}]
  %s4 = inlined_call_operand.vmem [shape: f32[17,512], index: 4, kind: input, shape index: {}]
  %s5 = inlined_call_operand.vmem [shape: f32[50,16], index: 5, kind: input, shape index: {}]
  %s6 = inlined_call_operand.hbm [shape: f32[8,512], index: 6, kind: output, shape index: {0}]
  %s7 = inlined_call_operand.hbm [shape: f32[8,512], index: 7, kind: output, shape index: {1}]
  %s8 = inlined_call_operand.vmem [shape: f32[8,128], index: 8, kind: output, shape index: {2}]
  %9 = xla_tuple %s6, %s7, %s8
  %s10 = sld [smem:[#allocation0]]
  $region50: #{user_autoenc_vae_bow_forward.1} parent=0
    _
  %s12 = ssub.s32 1, %s10
  %s13 = scalar_select 0, %s12, %s10
  $region1: #{user_autoenc_vae_bow_forward.1} parent=0
    #allocation2 [shape = 'u8[16384]{0}', space=vmem, size = 0x4000, scoped, tag = 'output window, operand 0, single buffered']
    #allocation3 [shape = 's32[1]{0}', space=sflag, size = 0x4, scoped, tag = 'scoped memory for user_autoenc_vae_bow_forward.1']
    #allocation4 [shape = 'u8[16384]{0}', space=vmem, size = 0x4000, scoped, tag = 'output window, operand 1, single buffered']
    #allocation5 [shape = 's32[1]{0}', space=sflag, size = 0x4, scoped, tag = 'scoped memory for user_autoenc_vae_bow_forward.1']
    %14 = vsyncpa [#allocation3], 0
    %15 = vsyncpa [#allocation5], 0
    // Predicated region
    $region2: #{user_autoenc_vae_bow_forward.1} parent=1 // pred_check
      _
    $region3: #{user_autoenc_vae_bow_forward.1} parent=1 // pred_check_branch
      %17 = sbr.rel (0) target = $region5
    $region4: #{user_autoenc_vae_bow_forward.1} parent=1 // pred_region
      _
    $region5: #{user_autoenc_vae_bow_forward.1} parent=1 // pred_fallthru
      _
    // Predicated region
    $region6: #{user_autoenc_vae_bow_forward.1} parent=1 // pred_check
      _
    $region7: #{user_autoenc_vae_bow_forward.1} parent=1 // pred_check_branch
      %19 = sbr.rel (0) target = $region9
    $region8: #{user_autoenc_vae_bow_forward.1} parent=1 // pred_region
      _
    $region9: #{user_autoenc_vae_bow_forward.1} parent=1 // pred_fallthru
      _
    // Predicated region
    $region10: #{user_autoenc_vae_bow_forward.1} parent=1 // pred_check
      _
    $region11: #{user_autoenc_vae_bow_forward.1} parent=1 // pred_check_branch
      %21 = sbr.rel (0) target = $region13
    $region12: #{user_autoenc_vae_bow_forward.1} parent=1 // pred_region
      _
    $region13: #{user_autoenc_vae_bow_forward.1} parent=1 // pred_fallthru
      _
    // Predicated region
    $region14: #{user_autoenc_vae_bow_forward.1} parent=1 // pred_check
      _
    $region15: #{user_autoenc_vae_bow_forward.1} parent=1 // pred_check_branch
      %23 = sbr.rel (0) target = $region17
    $region16: #{user_autoenc_vae_bow_forward.1} parent=1 // pred_region
      _
    $region17: #{user_autoenc_vae_bow_forward.1} parent=1 // pred_fallthru
      _
    // Predicated region
    $region18: #{user_autoenc_vae_bow_forward.1} parent=1 // pred_check
      _
    $region19: #{user_autoenc_vae_bow_forward.1} parent=1 // pred_check_branch
      %25 = sbr.rel (0) target = $region21
    $region20: #{user_autoenc_vae_bow_forward.1} parent=1 // pred_region
      _
    $region21: #{user_autoenc_vae_bow_forward.1} parent=1 // pred_fallthru
      _
    // Predicated region
    $region22: #{user_autoenc_vae_bow_forward.1} parent=1 // pred_check
      _
    $region23: #{user_autoenc_vae_bow_forward.1} parent=1 // pred_check_branch
      %27 = sbr.rel (0) target = $region25
    $region24: #{user_autoenc_vae_bow_forward.1} parent=1 // pred_region
      _
    $region25: #{user_autoenc_vae_bow_forward.1} parent=1 // pred_fallthru
      _
    %v28 = vld [vmem:[%s0] sm:$0xff]
    %v29 = vld [vmem:[%s0 + $0x8] sm:$0xff]
    %v30 = vld [vmem:[%s0 + $0x10] sm:$0xff]
    %v31 = vld [vmem:[%s0 + $0x18] sm:$0xff]
    %vm32 = vcmp.gt.f32.partialorder %v28, 0.0
    %vm33 = vcmp.gt.f32.partialorder %v29, 0.0
    %vm34 = vcmp.gt.f32.partialorder %v30, 0.0
    %vm35 = vcmp.gt.f32.partialorder %v31, 0.0
    %v36 = vsel %vm32, 1, 0
    %v37 = vsel %vm33, 1, 0
    %v38 = vsel %vm34, 1, 0
    %v39 = vsel %vm35, 1, 0
    %v40 = vcvt.s32.f32 %v36
    %v41 = vcvt.s32.f32 %v37
    %v42 = vcvt.s32.f32 %v38
    %v43 = vcvt.s32.f32 %v39
    %44 = vst [vmem:[#allocation4] sm:$0xff] %v40
    %45 = vst [vmem:[#allocation4 + $0x8] sm:$0xff] %v41
    %46 = vst [vmem:[#allocation4 + $0x10] sm:$0xff] %v42
    %47 = vst [vmem:[#allocation4 + $0x18] sm:$0xff] %v43
    %v48 = vld [vmem:[%s5] sm:$0xff]
    %v49 = vld [vmem:[%s5 + $0x8] sm:$0xff]
    %v50 = vld [vmem:[%s5 + $0x10] sm:$0xff]
    %v51 = vld [vmem:[%s5 + $0x18] sm:$0xff]
    %v52 = vld [vmem:[%s5 + $0x20] sm:$0xff]
    %v53 = vld [vmem:[%s5 + $0x28] sm:$0xff]
    %v54 = vld [vmem:[%s5 + $0x30] sm:$0x1]
    %v55 = vld [vmem:[%s5 + $0x31] sm:$0x1]
    %v56 = vld [vmem:[%s1] sm:$0xff]
    %v57 = vld [vmem:[%s1 + $0x8] sm:$0xff]
    %v58 = vld [vmem:[%s1 + $0x10] sm:$0xff]
    %v59 = vld [vmem:[%s1 + $0x18] sm:$0xff]
    %v60 = vld [vmem:[%s1 + $0x20] sm:$0xff]
    %v61 = vld [vmem:[%s1 + $0x28] sm:$0xff]
    %v62 = vld [vmem:[%s1 + $0x30] sm:$0xff]
    %v63 = vld [vmem:[%s1 + $0x38] sm:$0xff]
    %v64 = vld [vmem:[%s1 + $0x40] sm:$0xff]
    %v65 = vld [vmem:[%s1 + $0x48] sm:$0xff]
    %v66 = vld [vmem:[%s1 + $0x50] sm:$0xff]
    %v67 = vld [vmem:[%s1 + $0x58] sm:$0xff]
    %v68 = vld [vmem:[%s1 + $0x60] sm:$0xff]
    %v69 = vld [vmem:[%s1 + $0x68] sm:$0xff]
    %v70 = vld [vmem:[%s1 + $0x70] sm:$0xff]
    %v71 = vld [vmem:[%s1 + $0x78] sm:$0xff]
    %v72 = vld [vmem:[%s1 + $0x80] sm:$0xff]
    %v73 = vld [vmem:[%s1 + $0x88] sm:$0xff]
    %v74 = vld [vmem:[%s1 + $0x90] sm:$0xff]
    %v75 = vld [vmem:[%s1 + $0x98] sm:$0xff]
    %v76 = vld [vmem:[%s1 + $0xa0] sm:$0xff]
    %v77 = vld [vmem:[%s1 + $0xa8] sm:$0xff]
    %v78 = vld [vmem:[%s1 + $0xb0] sm:$0xff]
    %v79 = vld [vmem:[%s1 + $0xb8] sm:$0xff]
    %v80 = vld [vmem:[%s1 + $0xc0] sm:$0xff]
    %v81 = vld [vmem:[%s1 + $0xc8] sm:$0xff]
    %v82 = vld [vmem:[%s1 + $0xd0] sm:$0xff]
    %v83 = vld [vmem:[%s1 + $0xd8] sm:$0xff]
    %v84 = vld [vmem:[%s1 + $0xe0] sm:$0xff]
    %v85 = vld [vmem:[%s1 + $0xe8] sm:$0xff]
    %v86 = vld [vmem:[%s1 + $0xf0] sm:$0xff]
    %v87 = vld [vmem:[%s1 + $0xf8] sm:$0xff]
    %v88 = vld [vmem:[%s1 + $0x100] sm:$0xff]
    %v89 = vld [vmem:[%s1 + $0x108] sm:$0xff]
    %v90 = vld [vmem:[%s1 + $0x110] sm:$0xff]
    %v91 = vld [vmem:[%s1 + $0x118] sm:$0xff]
    %v92 = vld [vmem:[%s1 + $0x120] sm:$0xff]
    %v93 = vld [vmem:[%s1 + $0x128] sm:$0xff]
    %v94 = vld [vmem:[%s1 + $0x130] sm:$0xff]
    %v95 = vld [vmem:[%s1 + $0x138] sm:$0xff]
    %v96 = vld [vmem:[%s1 + $0x140] sm:$0xff]
    %v97 = vld [vmem:[%s1 + $0x148] sm:$0xff]
    %v98 = vld [vmem:[%s1 + $0x150] sm:$0xff]
    %v99 = vld [vmem:[%s1 + $0x158] sm:$0xff]
    %v100 = vld [vmem:[%s1 + $0x160] sm:$0xff]
    %v101 = vld [vmem:[%s1 + $0x168] sm:$0xff]
    %v102 = vld [vmem:[%s1 + $0x170] sm:$0xff]
    %v103 = vld [vmem:[%s1 + $0x178] sm:$0xff]
    %v104 = vld [vmem:[%s1 + $0x180] sm:$0xff]
    %v105 = vld [vmem:[%s1 + $0x188] sm:$0xff]
    %v106 = vld [vmem:[%s1 + $0x190] sm:$0xff]
    %v107 = vld [vmem:[%s1 + $0x198] sm:$0xff]
    %v108 = vld [vmem:[%s1 + $0x1a0] sm:$0xff]
    %v109 = vld [vmem:[%s1 + $0x1a8] sm:$0xff]
    %v110 = vld [vmem:[%s1 + $0x1b0] sm:$0xff]
    %v111 = vld [vmem:[%s1 + $0x1b8] sm:$0xff]
    %v112 = vld [vmem:[%s1 + $0x1c0] sm:$0xff]
    %v113 = vld [vmem:[%s1 + $0x1c8] sm:$0xff]
    %v114 = vld [vmem:[%s1 + $0x1d0] sm:$0xff]
    %v115 = vld [vmem:[%s1 + $0x1d8] sm:$0xff]
    %v116 = vld [vmem:[%s1 + $0x1e0] sm:$0xff]
    %v117 = vld [vmem:[%s1 + $0x1e8] sm:$0xff]
    %v118 = vld [vmem:[%s1 + $0x1f0] sm:$0xff]
    %v119 = vld [vmem:[%s1 + $0x1f8] sm:$0xff]
    %v120 = vld [vmem:[%s1 + $0x200] sm:$0x1]
    %v121 = vperm.slane %v120, 0
    %122 = vmatpush.msra.mxu0 %v71
    %123 = vmatpush.msra.mxu0 %v70
    %124 = vmatpush.msra.mxu0 %v69
    %125 = vmatpush.msra.mxu0 %v68
    %126 = vmatpush.msra.mxu0 %v67
    %127 = vmatpush.msra.mxu0 %v66
    %128 = vmatpush.msra.mxu0 %v65
    %129 = vmatpush.msra.mxu0 %v64
    %130 = vmatpush.msra.mxu0 %v63
    %131 = vmatpush.msra.mxu0 %v62
    %132 = vmatpush.msra.mxu0 %v61
    %133 = vmatpush.msra.mxu0 %v60
    %134 = vmatpush.msra.mxu0 %v59
    %135 = vmatpush.msra.mxu0 %v58
    %136 = vmatpush.msra.mxu0 %v57
    %137 = vmatpush.msra.mxu0 %v56
    %138 = vmatmul.f32.gmra.mxu0 %v28
    %v139 = vpop.f32.mrf.mxu0
    %v140 = vadd.f32 %v121, %v139
    %141 = vdwg.mxu0
    %142 = vmatpush.msra.mxu0 %v87
    %143 = vmatpush.msra.mxu0 %v86
    %144 = vmatpush.msra.mxu0 %v85
    %145 = vmatpush.msra.mxu0 %v84
    %146 = vmatpush.msra.mxu0 %v83
    %147 = vmatpush.msra.mxu0 %v82
    %148 = vmatpush.msra.mxu0 %v81
    %149 = vmatpush.msra.mxu0 %v80
    %150 = vmatpush.msra.mxu0 %v79
    %151 = vmatpush.msra.mxu0 %v78
    %152 = vmatpush.msra.mxu0 %v77
    %153 = vmatpush.msra.mxu0 %v76
    %154 = vmatpush.msra.mxu0 %v75
    %155 = vmatpush.msra.mxu0 %v74
    %156 = vmatpush.msra.mxu0 %v73
    %157 = vmatpush.msra.mxu0 %v72
    %158 = vmatmul.f32.gmra.mxu0 %v29
    %v159 = vpop.f32.mrf.mxu0
    %v160 = vadd.f32 %v140, %v159
    %161 = vdwg.mxu0
    %162 = vmatpush.msra.mxu0 %v103
    %163 = vmatpush.msra.mxu0 %v102
    %164 = vmatpush.msra.mxu0 %v101
    %165 = vmatpush.msra.mxu0 %v100
    %166 = vmatpush.msra.mxu0 %v99
    %167 = vmatpush.msra.mxu0 %v98
    %168 = vmatpush.msra.mxu0 %v97
    %169 = vmatpush.msra.mxu0 %v96
    %170 = vmatpush.msra.mxu0 %v95
    %171 = vmatpush.msra.mxu0 %v94
    %172 = vmatpush.msra.mxu0 %v93
    %173 = vmatpush.msra.mxu0 %v92
    %174 = vmatpush.msra.mxu0 %v91
    %175 = vmatpush.msra.mxu0 %v90
    %176 = vmatpush.msra.mxu0 %v89
    %177 = vmatpush.msra.mxu0 %v88
    %178 = vmatmul.f32.gmra.mxu0 %v30
    %v179 = vpop.f32.mrf.mxu0
    %v180 = vadd.f32 %v160, %v179
    %181 = vdwg.mxu0
    %182 = vmatpush.msra.mxu0 %v119
    %183 = vmatpush.msra.mxu0 %v118
    %184 = vmatpush.msra.mxu0 %v117
    %185 = vmatpush.msra.mxu0 %v116
    %186 = vmatpush.msra.mxu0 %v115
    %187 = vmatpush.msra.mxu0 %v114
    %188 = vmatpush.msra.mxu0 %v113
    %189 = vmatpush.msra.mxu0 %v112
    %190 = vmatpush.msra.mxu0 %v111
    %191 = vmatpush.msra.mxu0 %v110
    %192 = vmatpush.msra.mxu0 %v109
    %193 = vmatpush.msra.mxu0 %v108
    %194 = vmatpush.msra.mxu0 %v107
    %195 = vmatpush.msra.mxu0 %v106
    %196 = vmatpush.msra.mxu0 %v105
    %197 = vmatpush.msra.mxu0 %v104
    %198 = vmatmul.f32.gmra.mxu0 %v31
    %v199 = vpop.f32.mrf.mxu0
    %v200 = vadd.f32 %v180, %v199
    %201 = vdwg.mxu0
    %v202 = vtanh.pop %v200
    %v203 = vld [vmem:[%s2] sm:$0xff]
    %v204 = vld [vmem:[%s2 + $0x8] sm:$0xff]
    %v205 = vld [vmem:[%s2 + $0x10] sm:$0xff]
    %v206 = vld [vmem:[%s2 + $0x18] sm:$0xff]
    %v207 = vld [vmem:[%s2 + $0x20] sm:$0xff]
    %v208 = vld [vmem:[%s2 + $0x28] sm:$0xff]
    %v209 = vld [vmem:[%s2 + $0x30] sm:$0xff]
    %v210 = vld [vmem:[%s2 + $0x38] sm:$0xff]
    %v211 = vld [vmem:[%s2 + $0x40] sm:$0x1]
    %v212 = vperm.slane %v211, 0
    %vm213 = vcmask 523264
    %v215 = vsel %vm213, %v202, 0
    %217 = vmatpush.msra.mxu0 0.0
    %218 = vmatpush.msra.mxu0 0.0
    %219 = vmatpush.msra.mxu0 0.0
    %220 = vmatpush.msra.mxu0 0.0
    %221 = vmatpush.msra.mxu0 0.0
    %222 = vmatpush.msra.mxu0 0.0
    %223 = vmatpush.msra.mxu0 0.0
    %224 = vmatpush.msra.mxu0 0.0
    %225 = vmatpush.msra.mxu0 %v210
    %226 = vmatpush.msra.mxu0 %v209
    %227 = vmatpush.msra.mxu0 %v208
    %228 = vmatpush.msra.mxu0 %v207
    %229 = vmatpush.msra.mxu0 %v206
    %230 = vmatpush.msra.mxu0 %v205
    %231 = vmatpush.msra.mxu0 %v204
    %232 = vmatpush.msra.mxu0 %v203
    %233 = vmatmul.f32.gmra.mxu0 %v215
    %v234 = vpop.f32.mrf.mxu0
    %v235 = vadd.f32 %v212, %v234
    %236 = vdwg.mxu0
    %v237 = vtanh.pop %v235
    %v238 = vld [vmem:[%s3] sm:$0xff]
    %v239 = vld [vmem:[%s3 + $0x8] sm:$0xff]
    %v240 = vld [vmem:[%s3 + $0x10] sm:$0xff]
    %v241 = vld [vmem:[%s3 + $0x18] sm:$0xff]
    %v242 = vld [vmem:[%s3 + $0x20] sm:$0x1]
    %v243 = vperm.slane %v242, 0
    %vm244 = vcmask 261120
    %v246 = vsel %vm244, %v237, 0
    %248 = vmatpush.msra.mxu0 0.0
    %249 = vmatpush.msra.mxu0 0.0
    %250 = vmatpush.msra.mxu0 0.0
    %251 = vmatpush.msra.mxu0 0.0
    %252 = vmatpush.msra.mxu0 0.0
    %253 = vmatpush.msra.mxu0 0.0
    %254 = vmatpush.msra.mxu0 0.0
    %255 = vmatpush.msra.mxu0 0.0
    %256 = vmatpush.msra.mxu0 0.0
    %257 = vmatpush.msra.mxu0 0.0
    %258 = vmatpush.msra.mxu0 0.0
    %259 = vmatpush.msra.mxu0 0.0
    %260 = vmatpush.msra.mxu0 %v241
    %261 = vmatpush.msra.mxu0 %v240
    %262 = vmatpush.msra.mxu0 %v239
    %263 = vmatpush.msra.mxu0 %v238
    %264 = vmatmul.f32.gmra.mxu0 %v246
    %v265 = vpop.f32.mrf.mxu0
    %v266 = vadd.f32 %v243, %v265
    %267 = vdwg.mxu0
    %v268 = vmul.f32 %v266, 0.5
    %v269 = vmul.f32 %v268, 1.442695
    %v270 = vpow.pop %v269
    %272 = vrot.lane.b32.xlu0 %v270, 112
    %v273 = vpop.permute.xlu0 %272
    %v275 = vmul.f32 %v48, %v273
    %v276 = vadd.f32 %v266, %v275
    %v277 = vperm.slane %v54, 0
    %vm278 = vcmask 130048
    %v280 = vsel %vm278, %v276, 0
    %282 = vmatpush.msra.mxu0 0.0
    %283 = vmatpush.msra.mxu0 0.0
    %284 = vmatpush.msra.mxu0 0.0
    %285 = vmatpush.msra.mxu0 0.0
    %286 = vmatpush.msra.mxu0 0.0
    %287 = vmatpush.msra.mxu0 0.0
    %288 = vmatpush.msra.mxu0 0.0
    %289 = vmatpush.msra.mxu0 0.0
    %290 = vmatpush.msra.mxu0 0.0
    %291 = vmatpush.msra.mxu0 0.0
    %292 = vmatpush.msra.mxu0 0.0
    %293 = vmatpush.msra.mxu0 0.0
    %294 = vmatpush.msra.mxu0 0.0
    %295 = vmatpush.msra.mxu0 0.0
    %296 = vmatpush.msra.mxu0 %v51
    %297 = vmatpush.msra.mxu0 %v50
    %298 = vmatmul.f32.gmra.mxu0 %v280
    %v299 = vpop.f32.mrf.mxu0
    %v300 = vadd.f32 %v277, %v299
    %301 = vdwg.mxu0
    %v302 = vtanh.pop %v300
    %v303 = vperm.slane %v55, 0
    %vm304 = vcmask 64512
    %v306 = vsel %vm304, %v302, 0
    %308 = vmatpush.msra.mxu0 0.0
    %309 = vmatpush.msra.mxu0 0.0
    %310 = vmatpush.msra.mxu0 0.0
    %311 = vmatpush.msra.mxu0 0.0
    %312 = vmatpush.msra.mxu0 0.0
    %313 = vmatpush.msra.mxu0 0.0
    %314 = vmatpush.msra.mxu0 0.0
    %315 = vmatpush.msra.mxu0 0.0
    %316 = vmatpush.msra.mxu0 0.0
    %317 = vmatpush.msra.mxu0 0.0
    %318 = vmatpush.msra.mxu0 0.0
    %319 = vmatpush.msra.mxu0 0.0
    %320 = vmatpush.msra.mxu0 0.0
    %321 = vmatpush.msra.mxu0 0.0
    %322 = vmatpush.msra.mxu0 0.0
    %323 = vmatpush.msra.mxu0 %v53
    %324 = vmatmul.f32.gmra.mxu0 %v306
    %v325 = vpop.f32.mrf.mxu0
    %v326 = vadd.f32 %v303, %v325
    %327 = vdwg.mxu0
    %v328 = vsel %vm304, %v326, -inf
    %329 = vmax.xlane.f32.xlu0 %v328
    %v330 = vpop.xlane.xlu0 %329
    %v331 = vsub.f32 %v326, %v330
    %v332 = vmul.f32 %v331, 1.442695
    %v333 = vpow.pop %v332
    %v334 = vsel %vm304, %v333, 0.0
    %335 = vadd.xlane.f32.xlu0 %v334
    %v336 = vpop.xlane.xlu0 %335
    %v337 = vrcp.pop %v336
    %v338 = vmul.f32 %v336, %v337
    %v339 = vsub.f32 1.0, %v338
    %v340 = vmul.f32 %v337, %v339
    %v341 = vadd.f32 %v337, %v340
    %vm342 = vweird.f32 %v336
    %vm343 = vweird.f32 %v337
    %vm344 = vmor %vm342, %vm343
    %v345 = vsel %vm344, %v337, %v341
    %v346 = vand.u32 2147483647, %v336
    %vm347 = vcmp.eq.f32.partialorder %v346, 8.507059e+37
    %v348 = vand.u32 %v336, 2147483648
    %v349 = vor.u32 1.1754944e-38, %v348
    %v350 = vsel %vm347, %v349, %v345
    %v351 = vmul.f32 %v333, %v350
    %v352 = vadd.f32 %v351, 1e-10
    %v353 = vlog2.pop %v352
    %v354 = vmul.f32 %v353, 0.6931472
    %v355 = vadd.f32 %v354, %v52
    %v356 = vrcp.pop 0.5
    %v357 = vmul.f32 0.5, %v356
    %v358 = vsub.f32 1.0, %v357
    %v359 = vmul.f32 %v356, %v358
    %v360 = vadd.f32 %v356, %v359
    %vm361 = vweird.f32 %v356
    %v362 = vsel %vm361, %v356, %v360
    %v363 = vmul.f32 %v355, %v362
    %v364 = vsel %vm304, %v363, -inf
    %365 = vmax.xlane.f32.xlu0 %v364
    %v366 = vpop.xlane.xlu0 %365
    %v367 = vsub.f32 %v363, %v366
    %v368 = vmul.f32 %v367, 1.442695
    %v369 = vpow.pop %v368
    %v370 = vsel %vm304, %v369, 0.0
    %371 = vadd.xlane.f32.xlu0 %v370
    %v372 = vpop.xlane.xlu0 %371
    %v373 = vrcp.pop %v372
    %v374 = vmul.f32 %v372, %v373
    %v375 = vsub.f32 1.0, %v374
    %v376 = vmul.f32 %v373, %v375
    %v377 = vadd.f32 %v373, %v376
    %vm378 = vweird.f32 %v372
    %vm379 = vweird.f32 %v373
    %vm380 = vmor %vm378, %vm379
    %v381 = vsel %vm380, %v373, %v377
    %v382 = vand.u32 2147483647, %v372
    %vm383 = vcmp.eq.f32.partialorder %v382, 8.507059e+37
    %v384 = vand.u32 %v372, 2147483648
    %v385 = vor.u32 1.1754944e-38, %v384
    %v386 = vsel %vm383, %v385, %v381
    %v387 = vmul.f32 %v369, %v386
    %v388 = vlaneseq
    %v389 = vand.u32 %v388, 127
    %v390 = vsel %vm304, %v387, -inf
    %391 = vmax.xlane.f32.xlu0 %v390
    %v392 = vpop.xlane.xlu0 %391
    %vm393 = vcmp.eq.f32.partialorder %v387, %v392
    %v394 = vsel %vm393, %v389, 8
    %v395 = vsel %vm304, %v394, 2147483647
    %v396 = vand.u32 %v395, 65535
    %v397 = vshra.s32 %v395, 16
    %v398 = vcvt.s32.f32 %v396
    %v399 = vcvt.s32.f32 %v397
    %400 = vmin.xlane.f32.xlu0 %v399
    %v401 = vpop.xlane.xlu0 %400
    %vm402 = vcmp.eq.f32.partialorder %v399, %v401
    %v403 = vsel %vm402, %v398, inf
    %404 = vmin.xlane.f32.xlu0 %v403
    %v405 = vpop.xlane.xlu0 %404
    %v406 = vcvt.f32.s32 %v405
    %v407 = vcvt.f32.s32 %v401
    %v408 = vshll.u32 %v407, 16
    %v409 = vadd.s32 %v408, %v406
    %v410 = vcvt.s32.f32 %v409
    %v411 = vld [vmem:[%s4] sm:$0xff]
    %v412 = vld [vmem:[%s4 + $0x8] sm:$0xff]
    %v413 = vld [vmem:[%s4 + $0x10] sm:$0xff]
    %v414 = vld [vmem:[%s4 + $0x18] sm:$0xff]
    %v415 = vld [vmem:[%s4 + $0x20] sm:$0xff]
    %v416 = vld [vmem:[%s4 + $0x28] sm:$0xff]
    %v417 = vld [vmem:[%s4 + $0x30] sm:$0xff]
    %v418 = vld [vmem:[%s4 + $0x38] sm:$0xff]
    %s419 = scalar_lea.vmem %s4, 64
    %v420 = vld [vmem:[%s419] ss:$8 sm:$0xf]
    %v422 = vperm.slane %v420, 0
    %v423 = vperm.slane %v420, 1
    %v424 = vperm.slane %v420, 2
    %v425 = vperm.slane %v420, 3
    %430 = vmatpush.msra.mxu0 0.0
    %431 = vmatpush.msra.mxu0 0.0
    %432 = vmatpush.msra.mxu0 0.0
    %433 = vmatpush.msra.mxu0 0.0
    %434 = vmatpush.msra.mxu0 0.0
    %435 = vmatpush.msra.mxu0 0.0
    %436 = vmatpush.msra.mxu0 0.0
    %437 = vmatpush.msra.mxu0 0.0
    %438 = vmatpush.msra.mxu0 0.0
    %439 = vmatpush.msra.mxu0 0.0
    %440 = vmatpush.msra.mxu0 0.0
    %441 = vmatpush.msra.mxu0 0.0
    %442 = vmatpush.msra.mxu0 0.0
    %443 = vmatpush.msra.mxu0 0.0
    %444 = vmatpush.msra.mxu0 %v415
    %445 = vmatpush.msra.mxu0 %v411
    %446 = vmatmul.f32.gmra.mxu0 %v280
    %v447 = vpop.f32.mrf.mxu0
    %v448 = vadd.f32 %v422, %v447
    %449 = vdwg.mxu0
    %450 = vmatpush.msra.mxu0 0.0
    %451 = vmatpush.msra.mxu0 0.0
    %452 = vmatpush.msra.mxu0 0.0
    %453 = vmatpush.msra.mxu0 0.0
    %454 = vmatpush.msra.mxu0 0.0
    %455 = vmatpush.msra.mxu0 0.0
    %456 = vmatpush.msra.mxu0 0.0
    %457 = vmatpush.msra.mxu0 0.0
    %458 = vmatpush.msra.mxu0 0.0
    %459 = vmatpush.msra.mxu0 0.0
    %460 = vmatpush.msra.mxu0 0.0
    %461 = vmatpush.msra.mxu0 0.0
    %462 = vmatpush.msra.mxu0 0.0
    %463 = vmatpush.msra.mxu0 0.0
    %464 = vmatpush.msra.mxu0 %v416
    %465 = vmatpush.msra.mxu0 %v412
    %466 = vmatmul.f32.gmra.mxu0 %v280
    %v467 = vpop.f32.mrf.mxu0
    %v468 = vadd.f32 %v423, %v467
    %469 = vdwg.mxu0
    %470 = vmatpush.msra.mxu0 0.0
    %471 = vmatpush.msra.mxu0 0.0
    %472 = vmatpush.msra.mxu0 0.0
    %473 = vmatpush.msra.mxu0 0.0
    %474 = vmatpush.msra.mxu0 0.0
    %475 = vmatpush.msra.mxu0 0.0
    %476 = vmatpush.msra.mxu0 0.0
    %477 = vmatpush.msra.mxu0 0.0
    %478 = vmatpush.msra.mxu0 0.0
    %479 = vmatpush.msra.mxu0 0.0
    %480 = vmatpush.msra.mxu0 0.0
    %481 = vmatpush.msra.mxu0 0.0
    %482 = vmatpush.msra.mxu0 0.0
    %483 = vmatpush.msra.mxu0 0.0
    %484 = vmatpush.msra.mxu0 %v417
    %485 = vmatpush.msra.mxu0 %v413
    %486 = vmatmul.f32.gmra.mxu0 %v280
    %v487 = vpop.f32.mrf.mxu0
    %v488 = vadd.f32 %v424, %v487
    %489 = vdwg.mxu0
    %490 = vmatpush.msra.mxu0 0.0
    %491 = vmatpush.msra.mxu0 0.0
    %492 = vmatpush.msra.mxu0 0.0
    %493 = vmatpush.msra.mxu0 0.0
    %494 = vmatpush.msra.mxu0 0.0
    %495 = vmatpush.msra.mxu0 0.0
    %496 = vmatpush.msra.mxu0 0.0
    %497 = vmatpush.msra.mxu0 0.0
    %498 = vmatpush.msra.mxu0 0.0
    %499 = vmatpush.msra.mxu0 0.0
    %500 = vmatpush.msra.mxu0 0.0
    %501 = vmatpush.msra.mxu0 0.0
    %502 = vmatpush.msra.mxu0 0.0
    %503 = vmatpush.msra.mxu0 0.0
    %504 = vmatpush.msra.mxu0 %v418
    %505 = vmatpush.msra.mxu0 %v414
    %506 = vmatmul.f32.gmra.mxu0 %v280
    %v507 = vpop.f32.mrf.mxu0
    %v508 = vadd.f32 %v425, %v507
    %509 = vdwg.mxu0
    %v510 = vsub.f32 0.0, %v448
    %v511 = vsub.f32 0.0, %v468
    %v512 = vsub.f32 0.0, %v488
    %v513 = vsub.f32 0.0, %v508
    %v514 = vmax.f32 %v510, %v511
    %v515 = vmax.f32 %v512, %v513
    %v516 = vmax.f32 %v514, %v515
    %517 = vmax.xlane.f32.xlu0 %v516
    %v518 = vpop.xlane.xlu0 %517
    %v519 = vsub.f32 %v510, %v518
    %v520 = vsub.f32 %v511, %v518
    %v521 = vsub.f32 %v512, %v518
    %v522 = vsub.f32 %v513, %v518
    %v523 = vmul.f32 %v519, 1.442695
    %v524 = vpow.pop %v523
    %v525 = vmul.f32 %v520, 1.442695
    %v526 = vpow.pop %v525
    %v527 = vmul.f32 %v521, 1.442695
    %v528 = vpow.pop %v527
    %v529 = vmul.f32 %v522, 1.442695
    %v530 = vpow.pop %v529
    %v531 = vadd.f32 %v524, %v526
    %v532 = vadd.f32 %v531, %v528
    %v533 = vadd.f32 %v532, %v530
    %534 = vadd.xlane.f32.xlu0 %v533
    %v535 = vpop.xlane.xlu0 %534
    %v536 = vrcp.pop %v535
    %v537 = vmul.f32 %v524, %v536
    %v538 = vmul.f32 %v526, %v536
    %v539 = vmul.f32 %v528, %v536
    %v540 = vmul.f32 %v530, %v536
    %v541 = vadd.f32 %v537, 0.0001
    %v542 = vadd.f32 %v538, 0.0001
    %v543 = vadd.f32 %v539, 0.0001
    %v544 = vadd.f32 %v540, 0.0001
    %v545 = vlog2.pop %v541
    %v546 = vmul.f32 %v545, 0.6931472
    %v547 = vlog2.pop %v542
    %v548 = vmul.f32 %v547, 0.6931472
    %v549 = vlog2.pop %v543
    %v550 = vmul.f32 %v549, 0.6931472
    %v551 = vlog2.pop %v544
    %v552 = vmul.f32 %v551, 0.6931472
    %553 = vst [vmem:[#allocation2] sm:$0xff] %v546
    %554 = vst [vmem:[#allocation2 + $0x8] sm:$0xff] %v548
    %555 = vst [vmem:[#allocation2 + $0x10] sm:$0xff] %v550
    %556 = vst [vmem:[#allocation2 + $0x18] sm:$0xff] %v552
    %v557 = vsel %vm304, %v387, 0.0
    %558 = vadd.xlane.f32.xlu0 %v557
    %v559 = vpop.xlane.xlu0 %558
    %561 = vrot.lane.b32.xlu0 %v266, 112
    %v562 = vpop.permute.xlu0 %561
    %v564 = vsel %vm278, %v562, 0.0
    %565 = vadd.xlane.f32.xlu0 %v564
    %v566 = vpop.xlane.xlu0 %565
    %v567 = vmul.f32 %v276, %v276
    %v568 = vsel %vm278, %v567, 0.0
    %569 = vadd.xlane.f32.xlu0 %v568
    %v570 = vpop.xlane.xlu0 %569
    %v572 = vsel %vm278, %v49, 0
    %574 = vmatpush.xpose.msra.mxu0 0.0
    %575 = vmatpush.xpose.msra.mxu0 0.0
    %576 = vmatpush.xpose.msra.mxu0 0.0
    %577 = vmatpush.xpose.msra.mxu0 0.0
    %578 = vmatpush.xpose.msra.mxu0 0.0
    %579 = vmatpush.xpose.msra.mxu0 0.0
    %580 = vmatpush.xpose.msra.mxu0 0.0
    %581 = vmatpush.xpose.msra.mxu0 0.0
    %582 = vmatpush.xpose.msra.mxu0 0.0
    %583 = vmatpush.xpose.msra.mxu0 0.0
    %584 = vmatpush.xpose.msra.mxu0 0.0
    %585 = vmatpush.xpose.msra.mxu0 0.0
    %586 = vmatpush.xpose.msra.mxu0 0.0
    %587 = vmatpush.xpose.msra.mxu0 0.0
    %588 = vmatpush.xpose.msra.mxu0 0.0
    %589 = vmatpush.xpose.msra.mxu0 %v572
    %590 = vmatmul.f32.gmra.mxu0 %v280
    %v591 = vpop.f32.mrf.mxu0
    %v592 = vadd.f32 0.0, %v591
    %593 = vdwg.mxu0
    %v594 = vmul.f32 %v49, %v49
    %v595 = vsel %vm278, %v594, 0.0
    %596 = vadd.xlane.f32.xlu0 %v595
    %v597 = vpop.xlane.xlu0 %596
    %v598 = vmul.f32 %v387, %v592
    %v599 = vsel %vm304, %v598, 0.0
    %600 = vadd.xlane.f32.xlu0 %v599
    %v601 = vpop.xlane.xlu0 %600
    %v603 = vsel %vm304, %v387, 0
    %605 = vmatpush.msra.mxu0 0.0
    %606 = vmatpush.msra.mxu0 0.0
    %607 = vmatpush.msra.mxu0 0.0
    %608 = vmatpush.msra.mxu0 0.0
    %609 = vmatpush.msra.mxu0 0.0
    %610 = vmatpush.msra.mxu0 0.0
    %611 = vmatpush.msra.mxu0 0.0
    %612 = vmatpush.msra.mxu0 0.0
    %613 = vmatpush.msra.mxu0 0.0
    %614 = vmatpush.msra.mxu0 0.0
    %615 = vmatpush.msra.mxu0 0.0
    %616 = vmatpush.msra.mxu0 0.0
    %617 = vmatpush.msra.mxu0 0.0
    %618 = vmatpush.msra.mxu0 0.0
    %619 = vmatpush.msra.mxu0 0.0
    %620 = vmatpush.msra.mxu0 %v597
    %621 = vmatmul.f32.gmra.mxu0 %v603
    %v622 = vpop.f32.mrf.mxu0
    %v623 = vadd.f32 0.0, %v622
    %624 = vdwg.mxu0
    %v625 = vmul.f32 %v559, -0.5
    %v626 = vmul.f32 %v625, %v566
    %v627 = vmul.f32 %v559, %v570
    %v628 = vmul.f32 %v601, 2.0
    %v629 = vsub.f32 %v627, %v628
    %v630 = vadd.f32 %v629, %v623
    %v631 = vmul.f32 %v630, 0.5
    %v632 = vadd.f32 %v626, %v631
    %vm633 = vcmask 7168
    %v634 = vsel %vm633, %v632, 0.0
    %635 = vadd.xlane.f32.xlu0 %v634
    %v636 = vpop.xlane.xlu0 %635
    %v637 = vrot.slane %v636, 4
    %v638 = vadd.f32 %v636, %v637
    %v639 = vrot.slane %v638, 2
    %v640 = vadd.f32 %v638, %v639
    %v641 = vrot.slane %v640, 1
    %v642 = vadd.f32 %v640, %v641
    %s643 = vtos %v642
    %v644 = vrcp.pop 8.0
    %v645 = vmul.f32 8.0, %v644
    %v646 = vsub.f32 1.0, %v645
    %v647 = vmul.f32 %v644, %v646
    %v648 = vadd.f32 %v644, %v647
    %vm649 = vweird.f32 %v644
    %v650 = vsel %vm649, %v644, %v648
    %s651 = vtos %v650
    %s652 = smul.f32 %s643, %s651
    %v653 = vlaneseq
    %v654 = vshrl.u32 %v653, 7
    %vm655 = vcmp.eq.s32.totalorder %v654, %v389
    %v656 = vsel %vm655, 1, 0
    %v657 = vcvt.s32.f32 %v656
    %vm658 = vcmp.eq.s32.totalorder %v389, 8
    %v659 = vsel %vm658, 1, 0
    %v660 = vcvt.s32.f32 %v659
    %v661 = vmul.f32 %v410, %v660
    %662 = vmatpush.msra.mxu0 0.0
    %663 = vmatpush.msra.mxu0 0.0
    %664 = vmatpush.msra.mxu0 0.0
    %665 = vmatpush.msra.mxu0 0.0
    %666 = vmatpush.msra.mxu0 0.0
    %667 = vmatpush.msra.mxu0 0.0
    %668 = vmatpush.msra.mxu0 0.0
    %669 = vmatpush.msra.mxu0 0.0
    %670 = vmatpush.msra.mxu0 0.0
    %671 = vmatpush.msra.mxu0 0.0
    %672 = vmatpush.msra.mxu0 0.0
    %673 = vmatpush.msra.mxu0 0.0
    %674 = vmatpush.msra.mxu0 0.0
    %675 = vmatpush.msra.mxu0 0.0
    %676 = vmatpush.msra.mxu0 0.0
    %677 = vmatpush.msra.mxu0 %v657
    %678 = vmatmul.f32.gmra.mxu0 %v603
    %v679 = vpop.f32.mrf.mxu0
    %v680 = vadd.f32 %v661, %v679
    %681 = vdwg.mxu0
    %vm682 = vcmp.eq.s32.totalorder %v389, 9
    %v683 = vsel %vm682, 1, 0
    %v684 = vcvt.s32.f32 %v683
    %v685 = vstv %s652
    %v686 = vmul.f32 %v685, %v684
    %v687 = vadd.f32 %v680, %v686
    %688 = vst [vmem:[%s8] sm:$0xff] %v687
    // Predicated region
    $region26: #{user_autoenc_vae_bow_forward.1} parent=1 // pred_check
      _
    $region27: #{user_autoenc_vae_bow_forward.1} parent=1 // pred_check_branch
      %690 = sbr.rel (0) target = $region29
    $region28: #{user_autoenc_vae_bow_forward.1} parent=1 // pred_region
      %692 = vsyncadd [#allocation3], 0
      %s694 = sshll.u32 [#allocation2], 4
      %s695 = int_to_ptr.vmem [resolvable:$true] %s694
      %s696 = sshll.u32 %s6, 4
      %s697 = int_to_ptr.hbm [resolvable:$true] %s696
      %699 = dma.vmem_to_hbm [thread:$0]  %s695, 512, %s697, [#allocation3]
    $region29: #{user_autoenc_vae_bow_forward.1} parent=1 // pred_fallthru
      _
    // Predicated region
    $region30: #{user_autoenc_vae_bow_forward.1} parent=1 // pred_check
      _
    $region31: #{user_autoenc_vae_bow_forward.1} parent=1 // pred_check_branch
      %701 = sbr.rel (0) target = $region33
    $region32: #{user_autoenc_vae_bow_forward.1} parent=1 // pred_region
      %703 = vsyncadd [#allocation5], 0
      %s705 = sshll.u32 [#allocation4], 4
      %s706 = int_to_ptr.vmem [resolvable:$true] %s705
      %s707 = sshll.u32 %s7, 4
      %s708 = int_to_ptr.hbm [resolvable:$true] %s707
      %710 = dma.vmem_to_hbm [thread:$0]  %s706, 512, %s708, [#allocation5]
    $region33: #{user_autoenc_vae_bow_forward.1} parent=1 // pred_fallthru
      _
    // Predicated region
    $region34: #{user_autoenc_vae_bow_forward.1} parent=1 // pred_check
      _
    $region35: #{user_autoenc_vae_bow_forward.1} parent=1 // pred_check_branch
      %712 = sbr.rel (0) target = $region37
    $region36: #{user_autoenc_vae_bow_forward.1} parent=1 // pred_region
      _
    $region37: #{user_autoenc_vae_bow_forward.1} parent=1 // pred_fallthru
      _
    // Predicated region
    $region38: #{user_autoenc_vae_bow_forward.1} parent=1 // pred_check
      _
    $region39: #{user_autoenc_vae_bow_forward.1} parent=1 // pred_check_branch
      %714 = sbr.rel (0) target = $region41
    $region40: #{user_autoenc_vae_bow_forward.1} parent=1 // pred_region
      %716 = dma.done [#allocation3], 512
    $region41: #{user_autoenc_vae_bow_forward.1} parent=1 // pred_fallthru
      _
    // Predicated region
    $region42: #{user_autoenc_vae_bow_forward.1} parent=1 // pred_check
      _
    $region43: #{user_autoenc_vae_bow_forward.1} parent=1 // pred_check_branch
      %718 = sbr.rel (0) target = $region45
    $region44: #{user_autoenc_vae_bow_forward.1} parent=1 // pred_region
      %720 = dma.done [#allocation5], 512
    $region45: #{user_autoenc_vae_bow_forward.1} parent=1 // pred_fallthru
      _
    // Predicated region
    $region46: #{user_autoenc_vae_bow_forward.1} parent=1 // pred_check
      _
    $region47: #{user_autoenc_vae_bow_forward.1} parent=1 // pred_check_branch
      %722 = sbr.rel (0) target = $region49
    $region48: #{user_autoenc_vae_bow_forward.1} parent=1 // pred_region
      _
    $region49: #{user_autoenc_vae_bow_forward.1} parent=1 // pred_fallthru
      _
    %723 = vsyncpa [#allocation3], 1
    %724 = vsyncpa [#allocation5], 1

</llo_original>
